<compile_context>
chip_gen: v5e
topology: v5e:2x2
jax: 0.10.0
libtpu: 0.0.40
codegen_flags: <defaults>
</compile_context>

<pallas_src>
import functools

import jax
import jax.numpy as jnp
from jax.experimental import pallas as pl
from jax.experimental.pallas import tpu as pltpu


def _round_up(n, m):
    return ((n + m - 1) // m) * m


def _gated_attn_kernel(x_ref, wab_ref, bab_ref, wc_ref, bc_ref, A_ref, *, D):
    x = x_ref[...]                                  # (tm, L)   streamed tile
    wab = wab_ref[...]                              # (L, 2D)   resident
    bab = bab_ref[...]                              # (1, 2D)   resident
    # One fused MXU matmul for both gate branches, f32 accumulation.
    h = jnp.dot(x, wab, preferred_element_type=jnp.float32) + bab  # (tm, 2D)
    a = jnp.tanh(h[:, :D])                          # Tanh branch    (EUP)
    b = jax.nn.sigmoid(h[:, D:])                    # Sigmoid branch (EUP)
    g = a * b                                       # gate product   (VPU)
    A = jnp.dot(g, wc_ref[...], preferred_element_type=jnp.float32) + bc_ref[...]
    A_ref[...] = A.astype(A_ref.dtype)


@functools.partial(jax.jit, static_argnames=("tm",))
def att_net_gated_dual(x, wa, ba, wb, bb, wc, bc, *, tm=None):
    """x: (N, L) float32. Weights are pre-transposed to (in, out); biases (1, out)."""
    N, L = x.shape
    D = wa.shape[1]
    n_tasks = wc.shape[1]

    # Fuse the two gate branches into one (L, 2D) weight / (1, 2D) bias.
    wab = jnp.concatenate([wa, wb], axis=1)
    bab = jnp.concatenate([ba, bb], axis=1)

    if tm is None:
        # Largest multiple-of-8 row tile that keeps each x buffer <= ~4 MiB
        # (double-buffered by the pipeline) and keeps >= 2 grid steps.
        rows_per_4mib = max(8, (((4 << 20) // (L * 4)) // 8) * 8)
        half_rows = _round_up(max(8, (N + 1) // 2), 8)
        tm = min(1024, rows_per_4mib, half_rows)

    N_pad = _round_up(N, tm)
    x_in = jnp.pad(x, ((0, N_pad - N), (0, 0))) if N_pad != N else x
    grid = (N_pad // tm,)

    cost = pl.CostEstimate(
        flops=2 * N_pad * (L * 2 * D + D * n_tasks),
        transcendentals=2 * N_pad * D,
        bytes_accessed=4 * (N_pad * L + N_pad * n_tasks
                            + 2 * L * D + 2 * D + D * n_tasks + n_tasks),
    )

    resident = lambda r, c: pl.BlockSpec((r, c), lambda i: (0, 0))
    A = pl.pallas_call(
        functools.partial(_gated_attn_kernel, D=D),
        out_shape=jax.ShapeDtypeStruct((N_pad, n_tasks), x.dtype),
        grid_spec=pltpu.PrefetchScalarGridSpec(
            num_scalar_prefetch=0,
            grid=grid,
            in_specs=[
                pl.BlockSpec((tm, L), lambda i: (i, 0)),   # x tile (streamed)
                resident(L, 2 * D),                        # [Wa | Wb]
                resident(1, 2 * D),                        # [ba | bb]
                resident(D, n_tasks),                      # Wc
                resident(1, n_tasks),                      # bc
            ],
            out_specs=pl.BlockSpec((tm, n_tasks), lambda i: (i, 0)),
        ),
        compiler_params=pltpu.CompilerParams(
            dimension_semantics=("parallel",),
        ),
        cost_estimate=cost,
    )(x_in, wab, bab, wc, bc)

    if N_pad != N:
        A = A[:N]
    # The module returns the untouched input; no kernel work / HBM writeback.
    return A, x


def init_params(key, L, D, n_tasks, dtype=jnp.float32):
    """PyTorch-style init: U(-1/sqrt(fan_in), 1/sqrt(fan_in)).
    Weights stored transposed: (in_features, out_features); biases (1, out)."""
    ks = jax.random.split(key, 6)

    def lin(kw, kb, fan_in, fan_out):
        bound = 1.0 / jnp.sqrt(fan_in)
        w = jax.random.uniform(kw, (fan_in, fan_out), dtype, -bound, bound)
        b = jax.random.uniform(kb, (1, fan_out), dtype, -bound, bound)
        return w, b

    wa, ba = lin(ks[0], ks[1], L, D)
    wb, bb = lin(ks[2], ks[3], L, D)
    wc, bc = lin(ks[4], ks[5], D, n_tasks)
    return wa, ba, wb, bb, wc, bc


def reference(x, wa, ba, wb, bb, wc, bc):
    a = jnp.tanh(x @ wa + ba)
    b = jax.nn.sigmoid(x @ wb + bb)
    return (a * b) @ wc + bc, x


if __name__ == "__main__":
    # Small shapes consistent with the module (dropout=False -> no dropout).
    # N is deliberately not a tile multiple to exercise the padding path.
    N, L, D, n_tasks = 300, 64, 32, 3
    key = jax.random.PRNGKey(0)
    kx, kp = jax.random.split(key)
    x = jax.random.normal(kx, (N, L), dtype=jnp.float32)
    params = init_params(kp, L, D, n_tasks)

    A, x_out = att_net_gated_dual(x, *params)
    jax.block_until_ready((A, x_out))

    A_ref, x_ref = reference(x, *params)
    assert A.shape == (N, n_tasks) and x_out.shape == (N, L)
    assert jnp.allclose(A, A_ref, atol=1e-5, rtol=1e-5)
    assert jnp.allclose(x_out, x_ref)
    print("KERNEL_OK")
</pallas_src>

<mosaic_0001>
module attributes {stable_mosaic.version = 11 : i64} {
  func.func @_gated_attn_kernel(%arg0: i32, %arg1: memref<152x64xf32, #tpu.memory_space<vmem>>, %arg2: memref<64x64xf32, #tpu.memory_space<vmem>>, %arg3: memref<1x64xf32, #tpu.memory_space<vmem>>, %arg4: memref<32x3xf32, #tpu.memory_space<vmem>>, %arg5: memref<1x3xf32, #tpu.memory_space<vmem>>, %arg6: memref<152x3xf32, #tpu.memory_space<vmem>>) attributes {dimension_semantics = [#tpu.dimension_semantics<parallel>], iteration_bounds = array<i64: 2>, scalar_prefetch = 0 : i64, scratch_operands = 0 : i64, tpu.core_type = #tpu.core_type<tc>, window_params = [{transform_indices = @transform_0, window_bounds = array<i64: 152, 64>}, {pipeline_mode = #tpu.pipeline_mode<synchronous>, transform_indices = @transform_1, window_bounds = array<i64: 64, 64>}, {pipeline_mode = #tpu.pipeline_mode<synchronous>, transform_indices = @transform_2, window_bounds = array<i64: 1, 64>}, {pipeline_mode = #tpu.pipeline_mode<synchronous>, transform_indices = @transform_3, window_bounds = array<i64: 32, 3>}, {pipeline_mode = #tpu.pipeline_mode<synchronous>, transform_indices = @transform_4, window_bounds = array<i64: 1, 3>}, {transform_indices = @transform_5, window_bounds = array<i64: 152, 3>}]} {
    %c0 = arith.constant 0 : index
    %c0_0 = arith.constant 0 : index
    %0 = vector.load %arg1[%c0, %c0_0] : memref<152x64xf32, #tpu.memory_space<vmem>>, vector<152x64xf32>
    %c0_1 = arith.constant 0 : index
    %c0_2 = arith.constant 0 : index
    %1 = vector.load %arg2[%c0_1, %c0_2] : memref<64x64xf32, #tpu.memory_space<vmem>>, vector<64x64xf32>
    %c0_3 = arith.constant 0 : index
    %c0_4 = arith.constant 0 : index
    %2 = vector.load %arg3[%c0_3, %c0_4] : memref<1x64xf32, #tpu.memory_space<vmem>>, vector<1x64xf32>
    %cst = arith.constant dense<0.000000e+00> : vector<152x64xf32>
    %3 = tpu.matmul %0, %1, %cst {dimension_numbers = #tpu.dot_dimension_numbers<[1], [0], [0], [1], [0, 0, 1, 1], [], []>} : vector<152x64xf32>, vector<64x64xf32>, vector<152x64xf32> -> vector<152x64xf32>
    %4 = vector.broadcast %2 : vector<1x64xf32> to vector<152x64xf32>
    %5 = arith.addf %3, %4 : vector<152x64xf32>
    %6 = vector.extract_strided_slice %5 {offsets = [0, 0], sizes = [152, 32], strides = [1, 1]} : vector<152x64xf32> to vector<152x32xf32>
    %7 = math.tanh %6 : vector<152x32xf32>
    %8 = vector.extract_strided_slice %5 {offsets = [0, 32], sizes = [152, 32], strides = [1, 1]} : vector<152x64xf32> to vector<152x32xf32>
    %9 = arith.negf %8 : vector<152x32xf32>
    %10 = math.exp %9 : vector<152x32xf32>
    %cst_5 = arith.constant 1.000000e+00 : f32
    %11 = vector.broadcast %cst_5 : f32 to vector<152x32xf32>
    %12 = arith.addf %11, %10 : vector<152x32xf32>
    %13 = arith.divf %11, %12 : vector<152x32xf32>
    %14 = arith.mulf %7, %13 : vector<152x32xf32>
    %c0_6 = arith.constant 0 : index
    %c0_7 = arith.constant 0 : index
    %15 = vector.load %arg4[%c0_6, %c0_7] : memref<32x3xf32, #tpu.memory_space<vmem>>, vector<32x3xf32>
    %cst_8 = arith.constant dense<0.000000e+00> : vector<152x3xf32>
    %16 = tpu.matmul %14, %15, %cst_8 {dimension_numbers = #tpu.dot_dimension_numbers<[1], [0], [0], [1], [0, 0, 1, 1], [], []>} : vector<152x32xf32>, vector<32x3xf32>, vector<152x3xf32> -> vector<152x3xf32>
    %c0_9 = arith.constant 0 : index
    %c0_10 = arith.constant 0 : index
    %17 = vector.load %arg5[%c0_9, %c0_10] : memref<1x3xf32, #tpu.memory_space<vmem>>, vector<1x3xf32>
    %18 = vector.broadcast %17 : vector<1x3xf32> to vector<152x3xf32>
    %19 = arith.addf %16, %18 : vector<152x3xf32>
    %c0_11 = arith.constant 0 : index
    %c0_12 = arith.constant 0 : index
    %20 = vector.load %arg6[%c0_11, %c0_12] : memref<152x3xf32, #tpu.memory_space<vmem>>, vector<152x3xf32>
    tpu.vector_store %arg6[%c0_11, %c0_12], %19 {strides = array<i32>} : memref<152x3xf32, #tpu.memory_space<vmem>>, vector<152x3xf32>,
    return
  }
  func.func @transform_0(%arg0: i32) -> (i32, i32) {
    %c0_i32 = arith.constant 0 : i32
    %c0_i32_0 = arith.constant 0 : i32
    return %arg0, %c0_i32 : i32, i32
  }
  func.func @transform_1(%arg0: i32) -> (i32, i32) {
    %c0_i32 = arith.constant 0 : i32
    %c0_i32_0 = arith.constant 0 : i32
    %c0_i32_1 = arith.constant 0 : i32
    return %c0_i32, %c0_i32_0 : i32, i32
  }
  func.func @transform_2(%arg0: i32) -> (i32, i32) {
    %c0_i32 = arith.constant 0 : i32
    %c0_i32_0 = arith.constant 0 : i32
    %c0_i32_1 = arith.constant 0 : i32
    return %c0_i32, %c0_i32_0 : i32, i32
  }
  func.func @transform_3(%arg0: i32) -> (i32, i32) {
    %c0_i32 = arith.constant 0 : i32
    %c0_i32_0 = arith.constant 0 : i32
    %c0_i32_1 = arith.constant 0 : i32
    return %c0_i32, %c0_i32_0 : i32, i32
  }
  func.func @transform_4(%arg0: i32) -> (i32, i32) {
    %c0_i32 = arith.constant 0 : i32
    %c0_i32_0 = arith.constant 0 : i32
    %c0_i32_1 = arith.constant 0 : i32
    return %c0_i32, %c0_i32_0 : i32, i32
  }
  func.func @transform_5(%arg0: i32) -> (i32, i32) {
    %c0_i32 = arith.constant 0 : i32
    %c0_i32_0 = arith.constant 0 : i32
    return %arg0, %c0_i32 : i32, i32
  }
}

</mosaic_0001>

<llo_original>
// kernel: att_net_gated_dual.1
$region0: #{att_net_gated_dual.1}
  #allocation0 [shape = 'u32[]', space=smem, size = 0x4, offset = 0x4, fixed_abs, tag = 'smem constant byte address 0x4 - core index']
  #allocation1 [shape = 'u32[72,128]{1,0:T(1,128)}', space=vmem, size = 0x9000, scoped, tag = 'internal scratch']
  %s0 = inlined_call_operand.vmem [shape: f32[304,64], index: 0, kind: input, shape index: {}]
  %s1 = inlined_call_operand.vmem [shape: f32[64,64], index: 1, kind: input, shape index: {}]
  %s2 = inlined_call_operand.vmem [shape: f32[1,64], index: 2, kind: input, shape index: {}]
  %s3 = inlined_call_operand.vmem [shape: f32[32,3], index: 3, kind: input, shape index: {}]
  %s4 = inlined_call_operand.vmem [shape: f32[1,3], index: 4, kind: input, shape index: {}]
  %s5 = inlined_call_operand.vmem [shape: f32[304,3], index: 5, kind: output, shape index: {}]
  %s6 = sld [smem:[#allocation0]]
  $region53: #{att_net_gated_dual.1} parent=0
    _
  %s8 = ssub.s32 1, %s6
  %s9 = scalar_select 0, %s8, %s6
  loop: start=0, step=1, limit=4
  $region2: #{att_net_gated_dual.1} parent=0 // loop_pre_header
    _
  $region3: #{att_net_gated_dual.1} parent=0 // loop_header
    %s11 = sphi 0, %s15
    %p12 = scmp.ge.s32.totalorder %s11, 4
    %s21 = sphi 0, %s23
    %s24 = sphi 0, %s21
    %s25 = sphi 0, %s24
    %s41 = sphi 0, %s25
    %s45 = sphi 0, %s45
    %s47 = sphi 0, %s45
    %s48 = sphi 0, %s47
    %s62 = sphi 0, %s48
    %s66 = sphi 0, %s66
    %s68 = sphi 0, %s66
    %s69 = sphi 0, %s68
    %s83 = sphi 0, %s69
    %s87 = sphi 0, %s87
    %s89 = sphi 0, %s87
    %s90 = sphi 0, %s89
    %s104 = sphi 0, %s90
    %s108 = sphi 0, %s108
    %s110 = sphi 0, %s108
    %s111 = sphi 0, %s110
    %s125 = sphi 0, %s111
    %s131 = sphi 0, %s133
    %s134 = sphi 0, %s131
    %s135 = sphi 0, %s134
    %s151 = sphi 0, %s135
  $region4: #{att_net_gated_dual.1} parent=0 // loop_header_branch
    %14 = sbr.rel (%p12) target = $region8
  $region5: #{att_net_gated_dual.1} parent=0 // loop_body
    %s16 = ssub.s32 %s11, 1
    %s17 = ssub.s32 %s11, 2
    %s18 = sadd.s32 %s11, 1
    %s19 = ssub.s32 %s11, %s18
    %p20 = scmp.eq.s32.totalorder %s19, 0
    %s22 = sadd.s32 %s21, 1
    %s23 = scalar_select %p20, %s21, %s22
    %p26 = pneg %p20
    %p27 = scmp.eq.s32.totalorder %s11, 1
    %p28 = por %p26, %p27
    %p29 = scmp.ne.s32.totalorder %s21, %s24
    %p30 = scmp.eq.s32.totalorder %s11, 0
    %p31 = por %p29, %p30
    %p32 = scmp.ne.s32.totalorder %s21, %s24
    %p33 = scmp.eq.s32.totalorder %s16, 1
    %p34 = por %p32, %p33
    %p35 = scmp.ne.s32.totalorder %s24, %s25
    %p36 = scmp.eq.s32.totalorder %s16, 0
    %p37 = por %p35, %p36
    %p38 = scmp.ne.s32.totalorder %s24, %s25
    %p39 = scmp.eq.s32.totalorder %s17, 1
    %p40 = por %p38, %p39
    %p42 = scmp.ne.s32.totalorder %s25, %s41
    %p43 = scmp.eq.s32.totalorder %s17, 0
    %p44 = por %p42, %p43
    %s46 = sadd.s32 %s45, 1
    %p49 = scmp.eq.s32.totalorder %s11, 1
    %p50 = scmp.ne.s32.totalorder %s45, %s47
    %p51 = scmp.eq.s32.totalorder %s11, 0
    %p52 = por %p50, %p51
    %p53 = scmp.ne.s32.totalorder %s45, %s47
    %p54 = scmp.eq.s32.totalorder %s16, 1
    %p55 = por %p53, %p54
    %p56 = scmp.ne.s32.totalorder %s47, %s48
    %p57 = scmp.eq.s32.totalorder %s16, 0
    %p58 = por %p56, %p57
    %p59 = scmp.ne.s32.totalorder %s47, %s48
    %p60 = scmp.eq.s32.totalorder %s17, 1
    %p61 = por %p59, %p60
    %p63 = scmp.ne.s32.totalorder %s48, %s62
    %p64 = scmp.eq.s32.totalorder %s17, 0
    %p65 = por %p63, %p64
    %s67 = sadd.s32 %s66, 1
    %p70 = scmp.eq.s32.totalorder %s11, 1
    %p71 = scmp.ne.s32.totalorder %s66, %s68
    %p72 = scmp.eq.s32.totalorder %s11, 0
    %p73 = por %p71, %p72
    %p74 = scmp.ne.s32.totalorder %s66, %s68
    %p75 = scmp.eq.s32.totalorder %s16, 1
    %p76 = por %p74, %p75
    %p77 = scmp.ne.s32.totalorder %s68, %s69
    %p78 = scmp.eq.s32.totalorder %s16, 0
    %p79 = por %p77, %p78
    %p80 = scmp.ne.s32.totalorder %s68, %s69
    %p81 = scmp.eq.s32.totalorder %s17, 1
    %p82 = por %p80, %p81
    %p84 = scmp.ne.s32.totalorder %s69, %s83
    %p85 = scmp.eq.s32.totalorder %s17, 0
    %p86 = por %p84, %p85
    %s88 = sadd.s32 %s87, 1
    %p91 = scmp.eq.s32.totalorder %s11, 1
    %p92 = scmp.ne.s32.totalorder %s87, %s89
    %p93 = scmp.eq.s32.totalorder %s11, 0
    %p94 = por %p92, %p93
    %p95 = scmp.ne.s32.totalorder %s87, %s89
    %p96 = scmp.eq.s32.totalorder %s16, 1
    %p97 = por %p95, %p96
    %p98 = scmp.ne.s32.totalorder %s89, %s90
    %p99 = scmp.eq.s32.totalorder %s16, 0
    %p100 = por %p98, %p99
    %p101 = scmp.ne.s32.totalorder %s89, %s90
    %p102 = scmp.eq.s32.totalorder %s17, 1
    %p103 = por %p101, %p102
    %p105 = scmp.ne.s32.totalorder %s90, %s104
    %p106 = scmp.eq.s32.totalorder %s17, 0
    %p107 = por %p105, %p106
    %s109 = sadd.s32 %s108, 1
    %p112 = scmp.eq.s32.totalorder %s11, 1
    %p113 = scmp.ne.s32.totalorder %s108, %s110
    %p114 = scmp.eq.s32.totalorder %s11, 0
    %p115 = por %p113, %p114
    %p116 = scmp.ne.s32.totalorder %s108, %s110
    %p117 = scmp.eq.s32.totalorder %s16, 1
    %p118 = por %p116, %p117
    %p119 = scmp.ne.s32.totalorder %s110, %s111
    %p120 = scmp.eq.s32.totalorder %s16, 0
    %p121 = por %p119, %p120
    %p122 = scmp.ne.s32.totalorder %s110, %s111
    %p123 = scmp.eq.s32.totalorder %s17, 1
    %p124 = por %p122, %p123
    %p126 = scmp.ne.s32.totalorder %s111, %s125
    %p127 = scmp.eq.s32.totalorder %s17, 0
    %p128 = por %p126, %p127
    %s129 = ssub.s32 %s11, %s18
    %p130 = scmp.eq.s32.totalorder %s129, 0
    %s132 = sadd.s32 %s131, 1
    %s133 = scalar_select %p130, %s131, %s132
    %p136 = pneg %p130
    %p137 = scmp.eq.s32.totalorder %s11, 1
    %p138 = por %p136, %p137
    %p139 = scmp.ne.s32.totalorder %s131, %s134
    %p140 = scmp.eq.s32.totalorder %s11, 0
    %p141 = por %p139, %p140
    %p142 = scmp.ne.s32.totalorder %s131, %s134
    %p143 = scmp.eq.s32.totalorder %s16, 1
    %p144 = por %p142, %p143
    %p145 = scmp.ne.s32.totalorder %s134, %s135
    %p146 = scmp.eq.s32.totalorder %s16, 0
    %p147 = por %p145, %p146
    %p148 = scmp.ne.s32.totalorder %s134, %s135
    %p149 = scmp.eq.s32.totalorder %s17, 1
    %p150 = por %p148, %p149
    %p152 = scmp.ne.s32.totalorder %s135, %s151
    %p153 = scmp.eq.s32.totalorder %s17, 0
    %p154 = por %p152, %p153
    %p155 = scmp.le.s32.totalorder 1, %s11
    %p156 = scmp.lt.s32.totalorder %s11, 3
    %p157 = pnand %p155, %p156
    %p158 = pneg %p157
    // Predicated region
    $region9: #{att_net_gated_dual.1} parent=5 // pred_check
      _
    $region10: #{att_net_gated_dual.1} parent=5 // pred_check_branch
      %160 = sbr.rel (%p157) target = $region12
    $region11: #{att_net_gated_dual.1} parent=5 // pred_region
      %s161 = ssub.s32 %s11, 1
      // Predicated region
      $region13: #{att_net_gated_dual.1} parent=11 // pred_check
        %p162 = pneg %p58
      $region14: #{att_net_gated_dual.1} parent=11 // pred_check_branch
        %164 = sbr.rel (%p162) target = $region16
      $region15: #{att_net_gated_dual.1} parent=11 // pred_region
        _
      $region16: #{att_net_gated_dual.1} parent=11 // pred_fallthru
        _
      // Predicated region
      $region17: #{att_net_gated_dual.1} parent=11 // pred_check
        %p165 = pneg %p79
      $region18: #{att_net_gated_dual.1} parent=11 // pred_check_branch
        %167 = sbr.rel (%p165) target = $region20
      $region19: #{att_net_gated_dual.1} parent=11 // pred_region
        _
      $region20: #{att_net_gated_dual.1} parent=11 // pred_fallthru
        _
      // Predicated region
      $region21: #{att_net_gated_dual.1} parent=11 // pred_check
        %p168 = pneg %p100
      $region22: #{att_net_gated_dual.1} parent=11 // pred_check_branch
        %170 = sbr.rel (%p168) target = $region24
      $region23: #{att_net_gated_dual.1} parent=11 // pred_region
        _
      $region24: #{att_net_gated_dual.1} parent=11 // pred_fallthru
        _
      // Predicated region
      $region25: #{att_net_gated_dual.1} parent=11 // pred_check
        %p171 = pneg %p121
      $region26: #{att_net_gated_dual.1} parent=11 // pred_check_branch
        %173 = sbr.rel (%p171) target = $region28
      $region27: #{att_net_gated_dual.1} parent=11 // pred_region
        _
      $region28: #{att_net_gated_dual.1} parent=11 // pred_fallthru
        _
    $region12: #{att_net_gated_dual.1} parent=5 // pred_fallthru
      _
    %p174 = scmp.lt.s32.totalorder %s11, 2
    // Predicated region
    $region29: #{att_net_gated_dual.1} parent=5 // pred_check
      %p175 = pneg %p174
    $region30: #{att_net_gated_dual.1} parent=5 // pred_check_branch
      %177 = sbr.rel (%p175) target = $region32
    $region31: #{att_net_gated_dual.1} parent=5 // pred_region
      // Predicated region
      $region33: #{att_net_gated_dual.1} parent=31 // pred_check
        %p178 = pneg %p31
      $region34: #{att_net_gated_dual.1} parent=31 // pred_check_branch
        %180 = sbr.rel (%p178) target = $region36
      $region35: #{att_net_gated_dual.1} parent=31 // pred_region
        %s181 = smul.u32 19, %s11
        %p182 = scmp.lt.s32.totalorder %s181, 37
        %s183 = scalar_select %p182, %s181, 37
        %s184 = smul.addr %s183, 8
        %s185 = scalar_lea.vmem %s0, %s184
        %s186 = smul.u32 19, %s11
      $region36: #{att_net_gated_dual.1} parent=31 // pred_fallthru
        _
    $region32: #{att_net_gated_dual.1} parent=5 // pred_fallthru
      _
    %p187 = scmp.le.s32.totalorder 1, %s11
    %p188 = scmp.lt.s32.totalorder %s11, 3
    %p189 = pnand %p187, %p188
    %p190 = pneg %p189
    // Predicated region
    $region37: #{att_net_gated_dual.1} parent=5 // pred_check
      _
    $region38: #{att_net_gated_dual.1} parent=5 // pred_check_branch
      %192 = sbr.rel (%p189) target = $region40
    $region39: #{att_net_gated_dual.1} parent=5 // pred_region
      %s193 = ssub.s32 %s11, 1
      %s194 = smul.u32 19, %s16
      %p195 = scmp.lt.s32.totalorder %s194, 37
      %s196 = scalar_select %p195, %s194, 37
      %s197 = smul.addr %s196, 8
      %s198 = scalar_lea.vmem %s0, %s197
      %p199 = pneg %p37
      %p200 = pneg %p34
      %p201 = pneg %p58
      %p202 = pneg %p55
      %p203 = pneg %p79
      %p204 = pneg %p76
      %p205 = pneg %p100
      %p206 = pneg %p97
      %p207 = pneg %p121
      %p208 = pneg %p118
      %p209 = pneg %p147
      %p210 = pneg %p144
      %s211 = smul.u32 19, %s16
      %p212 = scmp.lt.s32.totalorder %s211, 37
      %s213 = scalar_select %p212, %s211, 37
      %s214 = smul.addr %s213, 8
      %s215 = scalar_lea.vmem %s5, %s214
      %s216 = smul.u32 19, %s16
      %p217 = scmp.lt.s32.totalorder %s216, 37
      %s218 = scalar_select %p217, %s216, 37
      %s219 = smul.addr %s218, 8
      %s220 = scalar_lea.vmem %s0, %s219
      %s221 = smul.u32 19, %s16
      %s222 = smul.u32 19, %s16
      %p223 = scmp.lt.s32.totalorder %s222, 37
      %s224 = scalar_select %p223, %s222, 37
      %s225 = smul.addr %s224, 8
      %s226 = scalar_lea.vmem %s5, %s225
      %s227 = smul.u32 19, %s16
      %v228 = vld [vmem:[%s220] sm:$0xff]
      %v229 = vld [vmem:[%s220 + $0x8] sm:$0xff]
      %v230 = vld [vmem:[%s220 + $0x10] sm:$0xff]
      %v231 = vld [vmem:[%s220 + $0x18] sm:$0xff]
      %v232 = vld [vmem:[%s220 + $0x20] sm:$0xff]
      %v233 = vld [vmem:[%s220 + $0x28] sm:$0xff]
      %v234 = vld [vmem:[%s220 + $0x30] sm:$0xff]
      %v235 = vld [vmem:[%s220 + $0x38] sm:$0xff]
      %v236 = vld [vmem:[%s220 + $0x40] sm:$0xff]
      %v237 = vld [vmem:[%s220 + $0x48] sm:$0xff]
      %v238 = vld [vmem:[%s220 + $0x50] sm:$0xff]
      %v239 = vld [vmem:[%s220 + $0x58] sm:$0xff]
      %v240 = vld [vmem:[%s220 + $0x60] sm:$0xff]
      %v241 = vld [vmem:[%s220 + $0x68] sm:$0xff]
      %v242 = vld [vmem:[%s220 + $0x70] sm:$0xff]
      %v243 = vld [vmem:[%s220 + $0x78] sm:$0xff]
      %v244 = vld [vmem:[%s220 + $0x80] sm:$0xff]
      %v245 = vld [vmem:[%s220 + $0x88] sm:$0xff]
      %v246 = vld [vmem:[%s220 + $0x90] sm:$0xff]
      %v247 = vld [vmem:[%s1] sm:$0xff]
      %v248 = vld [vmem:[%s1 + $0x8] sm:$0xff]
      %v249 = vld [vmem:[%s1 + $0x10] sm:$0xff]
      %v250 = vld [vmem:[%s1 + $0x18] sm:$0xff]
      %v251 = vld [vmem:[%s1 + $0x20] sm:$0xff]
      %v252 = vld [vmem:[%s1 + $0x28] sm:$0xff]
      %v253 = vld [vmem:[%s1 + $0x30] sm:$0xff]
      %v254 = vld [vmem:[%s1 + $0x38] sm:$0xff]
      %v255 = vld [vmem:[%s2] sm:$0x1]
      %v257 = vperm.slane %v255, 0
      %vm259 = vcmask 523264
      %v261 = vsel %vm259, %v228, 0
      %v264 = vsel %vm259, %v229, 0
      %v267 = vsel %vm259, %v230, 0
      %v270 = vsel %vm259, %v231, 0
      %v273 = vsel %vm259, %v232, 0
      %v276 = vsel %vm259, %v233, 0
      %v279 = vsel %vm259, %v234, 0
      %v282 = vsel %vm259, %v235, 0
      %v285 = vsel %vm259, %v236, 0
      %v288 = vsel %vm259, %v237, 0
      %v291 = vsel %vm259, %v238, 0
      %v294 = vsel %vm259, %v239, 0
      %v297 = vsel %vm259, %v240, 0
      %v300 = vsel %vm259, %v241, 0
      %v303 = vsel %vm259, %v242, 0
      %v306 = vsel %vm259, %v243, 0
      %v309 = vsel %vm259, %v244, 0
      %v312 = vsel %vm259, %v245, 0
      %v315 = vsel %vm259, %v246, 0
      %317 = vmatpush.msra.mxu0 0.0
      %318 = vmatpush.msra.mxu0 0.0
      %319 = vmatpush.msra.mxu0 0.0
      %320 = vmatpush.msra.mxu0 0.0
      %321 = vmatpush.msra.mxu0 0.0
      %322 = vmatpush.msra.mxu0 0.0
      %323 = vmatpush.msra.mxu0 0.0
      %324 = vmatpush.msra.mxu0 0.0
      %325 = vmatpush.msra.mxu0 %v254
      %326 = vmatpush.msra.mxu0 %v253
      %327 = vmatpush.msra.mxu0 %v252
      %328 = vmatpush.msra.mxu0 %v251
      %329 = vmatpush.msra.mxu0 %v250
      %330 = vmatpush.msra.mxu0 %v249
      %331 = vmatpush.msra.mxu0 %v248
      %332 = vmatpush.msra.mxu0 %v247
      %333 = vmatmul.f32.gmra.mxu0 %v261
      %v334 = vpop.f32.mrf.mxu0
      %v335 = vadd.f32 %v257, %v334
      %336 = vmatmul.f32.gmra.mxu0 %v264
      %v337 = vpop.f32.mrf.mxu0
      %v338 = vadd.f32 %v257, %v337
      %339 = vmatmul.f32.gmra.mxu0 %v267
      %v340 = vpop.f32.mrf.mxu0
      %v341 = vadd.f32 %v257, %v340
      %342 = vmatmul.f32.gmra.mxu0 %v270
      %v343 = vpop.f32.mrf.mxu0
      %v344 = vadd.f32 %v257, %v343
      %345 = vmatmul.f32.gmra.mxu0 %v273
      %v346 = vpop.f32.mrf.mxu0
      %v347 = vadd.f32 %v257, %v346
      %348 = vmatmul.f32.gmra.mxu0 %v276
      %v349 = vpop.f32.mrf.mxu0
      %v350 = vadd.f32 %v257, %v349
      %351 = vmatmul.f32.gmra.mxu0 %v279
      %v352 = vpop.f32.mrf.mxu0
      %v353 = vadd.f32 %v257, %v352
      %354 = vmatmul.f32.gmra.mxu0 %v282
      %v355 = vpop.f32.mrf.mxu0
      %v356 = vadd.f32 %v257, %v355
      %357 = vmatmul.f32.gmra.mxu0 %v285
      %v358 = vpop.f32.mrf.mxu0
      %v359 = vadd.f32 %v257, %v358
      %360 = vmatmul.f32.gmra.mxu0 %v288
      %v361 = vpop.f32.mrf.mxu0
      %v362 = vadd.f32 %v257, %v361
      %363 = vmatmul.f32.gmra.mxu0 %v291
      %v364 = vpop.f32.mrf.mxu0
      %v365 = vadd.f32 %v257, %v364
      %366 = vmatmul.f32.gmra.mxu0 %v294
      %v367 = vpop.f32.mrf.mxu0
      %v368 = vadd.f32 %v257, %v367
      %369 = vmatmul.f32.gmra.mxu0 %v297
      %v370 = vpop.f32.mrf.mxu0
      %v371 = vadd.f32 %v257, %v370
      %372 = vmatmul.f32.gmra.mxu0 %v300
      %v373 = vpop.f32.mrf.mxu0
      %v374 = vadd.f32 %v257, %v373
      %375 = vmatmul.f32.gmra.mxu0 %v303
      %v376 = vpop.f32.mrf.mxu0
      %v377 = vadd.f32 %v257, %v376
      %378 = vmatmul.f32.gmra.mxu0 %v306
      %v379 = vpop.f32.mrf.mxu0
      %v380 = vadd.f32 %v257, %v379
      %381 = vmatmul.f32.gmra.mxu0 %v309
      %v382 = vpop.f32.mrf.mxu0
      %v383 = vadd.f32 %v257, %v382
      %384 = vmatmul.f32.gmra.mxu0 %v312
      %v385 = vpop.f32.mrf.mxu0
      %v386 = vadd.f32 %v257, %v385
      %387 = vmatmul.f32.gmra.mxu0 %v315
      %v388 = vpop.f32.mrf.mxu0
      %v389 = vadd.f32 %v257, %v388
      %390 = vdwg.mxu0
      %v391 = vtanh.pop %v335
      %v392 = vtanh.pop %v338
      %v393 = vtanh.pop %v341
      %v394 = vtanh.pop %v344
      %v395 = vtanh.pop %v347
      %v396 = vtanh.pop %v350
      %v397 = vtanh.pop %v353
      %v398 = vtanh.pop %v356
      %v399 = vtanh.pop %v359
      %v400 = vtanh.pop %v362
      %v401 = vtanh.pop %v365
      %v402 = vtanh.pop %v368
      %v403 = vtanh.pop %v371
      %v404 = vtanh.pop %v374
      %v405 = vtanh.pop %v377
      %v406 = vtanh.pop %v380
      %v407 = vtanh.pop %v383
      %v408 = vtanh.pop %v386
      %v409 = vtanh.pop %v389
      %v410 = vxor.u32 %v335, 2147483648
      %v411 = vxor.u32 %v338, 2147483648
      %v412 = vxor.u32 %v341, 2147483648
      %v413 = vxor.u32 %v344, 2147483648
      %v414 = vxor.u32 %v347, 2147483648
      %v415 = vxor.u32 %v350, 2147483648
      %v416 = vxor.u32 %v353, 2147483648
      %v417 = vxor.u32 %v356, 2147483648
      %v418 = vxor.u32 %v359, 2147483648
      %v419 = vxor.u32 %v362, 2147483648
      %v420 = vxor.u32 %v365, 2147483648
      %v421 = vxor.u32 %v368, 2147483648
      %v422 = vxor.u32 %v371, 2147483648
      %v423 = vxor.u32 %v374, 2147483648
      %v424 = vxor.u32 %v377, 2147483648
      %v425 = vxor.u32 %v380, 2147483648
      %v426 = vxor.u32 %v383, 2147483648
      %v427 = vxor.u32 %v386, 2147483648
      %v428 = vxor.u32 %v389, 2147483648
      %v429 = vmul.f32 %v410, 1.442695
      %v430 = vpow.pop %v429
      %v431 = vmul.f32 %v411, 1.442695
      %v432 = vpow.pop %v431
      %v433 = vmul.f32 %v412, 1.442695
      %v434 = vpow.pop %v433
      %v435 = vmul.f32 %v413, 1.442695
      %v436 = vpow.pop %v435
      %v437 = vmul.f32 %v414, 1.442695
      %v438 = vpow.pop %v437
      %v439 = vmul.f32 %v415, 1.442695
      %v440 = vpow.pop %v439
      %v441 = vmul.f32 %v416, 1.442695
      %v442 = vpow.pop %v441
      %v443 = vmul.f32 %v417, 1.442695
      %v444 = vpow.pop %v443
      %v445 = vmul.f32 %v418, 1.442695
      %v446 = vpow.pop %v445
      %v447 = vmul.f32 %v419, 1.442695
      %v448 = vpow.pop %v447
      %v449 = vmul.f32 %v420, 1.442695
      %v450 = vpow.pop %v449
      %v451 = vmul.f32 %v421, 1.442695
      %v452 = vpow.pop %v451
      %v453 = vmul.f32 %v422, 1.442695
      %v454 = vpow.pop %v453
      %v455 = vmul.f32 %v423, 1.442695
      %v456 = vpow.pop %v455
      %v457 = vmul.f32 %v424, 1.442695
      %v458 = vpow.pop %v457
      %v459 = vmul.f32 %v425, 1.442695
      %v460 = vpow.pop %v459
      %v461 = vmul.f32 %v426, 1.442695
      %v462 = vpow.pop %v461
      %v463 = vmul.f32 %v427, 1.442695
      %v464 = vpow.pop %v463
      %v465 = vmul.f32 %v428, 1.442695
      %v466 = vpow.pop %v465
      %v467 = vadd.f32 %v430, 1.0
      %v468 = vadd.f32 %v432, 1.0
      %v469 = vadd.f32 %v434, 1.0
      %v470 = vadd.f32 %v436, 1.0
      %v471 = vadd.f32 %v438, 1.0
      %v472 = vadd.f32 %v440, 1.0
      %v473 = vadd.f32 %v442, 1.0
      %v474 = vadd.f32 %v444, 1.0
      %v475 = vadd.f32 %v446, 1.0
      %v476 = vadd.f32 %v448, 1.0
      %v477 = vadd.f32 %v450, 1.0
      %v478 = vadd.f32 %v452, 1.0
      %v479 = vadd.f32 %v454, 1.0
      %v480 = vadd.f32 %v456, 1.0
      %v481 = vadd.f32 %v458, 1.0
      %v482 = vadd.f32 %v460, 1.0
      %v483 = vadd.f32 %v462, 1.0
      %v484 = vadd.f32 %v464, 1.0
      %v485 = vadd.f32 %v466, 1.0
      %v486 = vrcp.pop %v467
      %v487 = vmul.f32 %v467, %v486
      %v488 = vsub.f32 1.0, %v487
      %v489 = vmul.f32 %v486, %v488
      %v490 = vadd.f32 %v486, %v489
      %vm491 = vweird.f32 %v467
      %vm492 = vweird.f32 %v486
      %vm493 = vmor %vm491, %vm492
      %v494 = vsel %vm493, %v486, %v490
      %v495 = vand.u32 2147483647, %v467
      %vm496 = vcmp.eq.f32.partialorder %v495, 8.507059e+37
      %v497 = vand.u32 %v467, 2147483648
      %v498 = vor.u32 1.1754944e-38, %v497
      %v499 = vsel %vm496, %v498, %v494
      %v500 = vmul.f32 1.0, %v499
      %v501 = vrcp.pop %v468
      %v502 = vmul.f32 %v468, %v501
      %v503 = vsub.f32 1.0, %v502
      %v504 = vmul.f32 %v501, %v503
      %v505 = vadd.f32 %v501, %v504
      %vm506 = vweird.f32 %v468
      %vm507 = vweird.f32 %v501
      %vm508 = vmor %vm506, %vm507
      %v509 = vsel %vm508, %v501, %v505
      %v510 = vand.u32 2147483647, %v468
      %vm511 = vcmp.eq.f32.partialorder %v510, 8.507059e+37
      %v512 = vand.u32 %v468, 2147483648
      %v513 = vor.u32 1.1754944e-38, %v512
      %v514 = vsel %vm511, %v513, %v509
      %v515 = vmul.f32 1.0, %v514
      %v516 = vrcp.pop %v469
      %v517 = vmul.f32 %v469, %v516
      %v518 = vsub.f32 1.0, %v517
      %v519 = vmul.f32 %v516, %v518
      %v520 = vadd.f32 %v516, %v519
      %vm521 = vweird.f32 %v469
      %vm522 = vweird.f32 %v516
      %vm523 = vmor %vm521, %vm522
      %v524 = vsel %vm523, %v516, %v520
      %v525 = vand.u32 2147483647, %v469
      %vm526 = vcmp.eq.f32.partialorder %v525, 8.507059e+37
      %v527 = vand.u32 %v469, 2147483648
      %v528 = vor.u32 1.1754944e-38, %v527
      %v529 = vsel %vm526, %v528, %v524
      %v530 = vmul.f32 1.0, %v529
      %v531 = vrcp.pop %v470
      %v532 = vmul.f32 %v470, %v531
      %v533 = vsub.f32 1.0, %v532
      %v534 = vmul.f32 %v531, %v533
      %v535 = vadd.f32 %v531, %v534
      %vm536 = vweird.f32 %v470
      %vm537 = vweird.f32 %v531
      %vm538 = vmor %vm536, %vm537
      %v539 = vsel %vm538, %v531, %v535
      %v540 = vand.u32 2147483647, %v470
      %vm541 = vcmp.eq.f32.partialorder %v540, 8.507059e+37
      %v542 = vand.u32 %v470, 2147483648
      %v543 = vor.u32 1.1754944e-38, %v542
      %v544 = vsel %vm541, %v543, %v539
      %v545 = vmul.f32 1.0, %v544
      %v546 = vrcp.pop %v471
      %v547 = vmul.f32 %v471, %v546
      %v548 = vsub.f32 1.0, %v547
      %v549 = vmul.f32 %v546, %v548
      %v550 = vadd.f32 %v546, %v549
      %vm551 = vweird.f32 %v471
      %vm552 = vweird.f32 %v546
      %vm553 = vmor %vm551, %vm552
      %v554 = vsel %vm553, %v546, %v550
      %v555 = vand.u32 2147483647, %v471
      %vm556 = vcmp.eq.f32.partialorder %v555, 8.507059e+37
      %v557 = vand.u32 %v471, 2147483648
      %v558 = vor.u32 1.1754944e-38, %v557
      %v559 = vsel %vm556, %v558, %v554
      %v560 = vmul.f32 1.0, %v559
      %v561 = vrcp.pop %v472
      %v562 = vmul.f32 %v472, %v561
      %v563 = vsub.f32 1.0, %v562
      %v564 = vmul.f32 %v561, %v563
      %v565 = vadd.f32 %v561, %v564
      %vm566 = vweird.f32 %v472
      %vm567 = vweird.f32 %v561
      %vm568 = vmor %vm566, %vm567
      %v569 = vsel %vm568, %v561, %v565
      %v570 = vand.u32 2147483647, %v472
      %vm571 = vcmp.eq.f32.partialorder %v570, 8.507059e+37
      %v572 = vand.u32 %v472, 2147483648
      %v573 = vor.u32 1.1754944e-38, %v572
      %v574 = vsel %vm571, %v573, %v569
      %v575 = vmul.f32 1.0, %v574
      %v576 = vrcp.pop %v473
      %v577 = vmul.f32 %v473, %v576
      %v578 = vsub.f32 1.0, %v577
      %v579 = vmul.f32 %v576, %v578
      %v580 = vadd.f32 %v576, %v579
      %vm581 = vweird.f32 %v473
      %vm582 = vweird.f32 %v576
      %vm583 = vmor %vm581, %vm582
      %v584 = vsel %vm583, %v576, %v580
      %v585 = vand.u32 2147483647, %v473
      %vm586 = vcmp.eq.f32.partialorder %v585, 8.507059e+37
      %v587 = vand.u32 %v473, 2147483648
      %v588 = vor.u32 1.1754944e-38, %v587
      %v589 = vsel %vm586, %v588, %v584
      %v590 = vmul.f32 1.0, %v589
      %v591 = vrcp.pop %v474
      %v592 = vmul.f32 %v474, %v591
      %v593 = vsub.f32 1.0, %v592
      %v594 = vmul.f32 %v591, %v593
      %v595 = vadd.f32 %v591, %v594
      %vm596 = vweird.f32 %v474
      %vm597 = vweird.f32 %v591
      %vm598 = vmor %vm596, %vm597
      %v599 = vsel %vm598, %v591, %v595
      %v600 = vand.u32 2147483647, %v474
      %vm601 = vcmp.eq.f32.partialorder %v600, 8.507059e+37
      %v602 = vand.u32 %v474, 2147483648
      %v603 = vor.u32 1.1754944e-38, %v602
      %v604 = vsel %vm601, %v603, %v599
      %v605 = vmul.f32 1.0, %v604
      %v606 = vrcp.pop %v475
      %v607 = vmul.f32 %v475, %v606
      %v608 = vsub.f32 1.0, %v607
      %v609 = vmul.f32 %v606, %v608
      %v610 = vadd.f32 %v606, %v609
      %vm611 = vweird.f32 %v475
      %vm612 = vweird.f32 %v606
      %vm613 = vmor %vm611, %vm612
      %v614 = vsel %vm613, %v606, %v610
      %v615 = vand.u32 2147483647, %v475
      %vm616 = vcmp.eq.f32.partialorder %v615, 8.507059e+37
      %v617 = vand.u32 %v475, 2147483648
      %v618 = vor.u32 1.1754944e-38, %v617
      %v619 = vsel %vm616, %v618, %v614
      %v620 = vmul.f32 1.0, %v619
      %v621 = vrcp.pop %v476
      %v622 = vmul.f32 %v476, %v621
      %v623 = vsub.f32 1.0, %v622
      %v624 = vmul.f32 %v621, %v623
      %v625 = vadd.f32 %v621, %v624
      %vm626 = vweird.f32 %v476
      %vm627 = vweird.f32 %v621
      %vm628 = vmor %vm626, %vm627
      %v629 = vsel %vm628, %v621, %v625
      %v630 = vand.u32 2147483647, %v476
      %vm631 = vcmp.eq.f32.partialorder %v630, 8.507059e+37
      %v632 = vand.u32 %v476, 2147483648
      %v633 = vor.u32 1.1754944e-38, %v632
      %v634 = vsel %vm631, %v633, %v629
      %v635 = vmul.f32 1.0, %v634
      %v636 = vrcp.pop %v477
      %v637 = vmul.f32 %v477, %v636
      %v638 = vsub.f32 1.0, %v637
      %v639 = vmul.f32 %v636, %v638
      %v640 = vadd.f32 %v636, %v639
      %vm641 = vweird.f32 %v477
      %vm642 = vweird.f32 %v636
      %vm643 = vmor %vm641, %vm642
      %v644 = vsel %vm643, %v636, %v640
      %v645 = vand.u32 2147483647, %v477
      %vm646 = vcmp.eq.f32.partialorder %v645, 8.507059e+37
      %v647 = vand.u32 %v477, 2147483648
      %v648 = vor.u32 1.1754944e-38, %v647
      %v649 = vsel %vm646, %v648, %v644
      %v650 = vmul.f32 1.0, %v649
      %v651 = vrcp.pop %v478
      %v652 = vmul.f32 %v478, %v651
      %v653 = vsub.f32 1.0, %v652
      %v654 = vmul.f32 %v651, %v653
      %v655 = vadd.f32 %v651, %v654
      %vm656 = vweird.f32 %v478
      %vm657 = vweird.f32 %v651
      %vm658 = vmor %vm656, %vm657
      %v659 = vsel %vm658, %v651, %v655
      %v660 = vand.u32 2147483647, %v478
      %vm661 = vcmp.eq.f32.partialorder %v660, 8.507059e+37
      %v662 = vand.u32 %v478, 2147483648
      %v663 = vor.u32 1.1754944e-38, %v662
      %v664 = vsel %vm661, %v663, %v659
      %v665 = vmul.f32 1.0, %v664
      %v666 = vrcp.pop %v479
      %v667 = vmul.f32 %v479, %v666
      %v668 = vsub.f32 1.0, %v667
      %v669 = vmul.f32 %v666, %v668
      %v670 = vadd.f32 %v666, %v669
      %vm671 = vweird.f32 %v479
      %vm672 = vweird.f32 %v666
      %vm673 = vmor %vm671, %vm672
      %v674 = vsel %vm673, %v666, %v670
      %v675 = vand.u32 2147483647, %v479
      %vm676 = vcmp.eq.f32.partialorder %v675, 8.507059e+37
      %v677 = vand.u32 %v479, 2147483648
      %v678 = vor.u32 1.1754944e-38, %v677
      %v679 = vsel %vm676, %v678, %v674
      %v680 = vmul.f32 1.0, %v679
      %v681 = vrcp.pop %v480
      %v682 = vmul.f32 %v480, %v681
      %v683 = vsub.f32 1.0, %v682
      %v684 = vmul.f32 %v681, %v683
      %v685 = vadd.f32 %v681, %v684
      %vm686 = vweird.f32 %v480
      %vm687 = vweird.f32 %v681
      %vm688 = vmor %vm686, %vm687
      %v689 = vsel %vm688, %v681, %v685
      %v690 = vand.u32 2147483647, %v480
      %vm691 = vcmp.eq.f32.partialorder %v690, 8.507059e+37
      %v692 = vand.u32 %v480, 2147483648
      %v693 = vor.u32 1.1754944e-38, %v692
      %v694 = vsel %vm691, %v693, %v689
      %v695 = vmul.f32 1.0, %v694
      %v696 = vrcp.pop %v481
      %v697 = vmul.f32 %v481, %v696
      %v698 = vsub.f32 1.0, %v697
      %v699 = vmul.f32 %v696, %v698
      %v700 = vadd.f32 %v696, %v699
      %vm701 = vweird.f32 %v481
      %vm702 = vweird.f32 %v696
      %vm703 = vmor %vm701, %vm702
      %v704 = vsel %vm703, %v696, %v700
      %v705 = vand.u32 2147483647, %v481
      %vm706 = vcmp.eq.f32.partialorder %v705, 8.507059e+37
      %v707 = vand.u32 %v481, 2147483648
      %v708 = vor.u32 1.1754944e-38, %v707
      %v709 = vsel %vm706, %v708, %v704
      %v710 = vmul.f32 1.0, %v709
      %v711 = vrcp.pop %v482
      %v712 = vmul.f32 %v482, %v711
      %v713 = vsub.f32 1.0, %v712
      %v714 = vmul.f32 %v711, %v713
      %v715 = vadd.f32 %v711, %v714
      %vm716 = vweird.f32 %v482
      %vm717 = vweird.f32 %v711
      %vm718 = vmor %vm716, %vm717
      %v719 = vsel %vm718, %v711, %v715
      %v720 = vand.u32 2147483647, %v482
      %vm721 = vcmp.eq.f32.partialorder %v720, 8.507059e+37
      %v722 = vand.u32 %v482, 2147483648
      %v723 = vor.u32 1.1754944e-38, %v722
      %v724 = vsel %vm721, %v723, %v719
      %v725 = vmul.f32 1.0, %v724
      %v726 = vrcp.pop %v483
      %v727 = vmul.f32 %v483, %v726
      %v728 = vsub.f32 1.0, %v727
      %v729 = vmul.f32 %v726, %v728
      %v730 = vadd.f32 %v726, %v729
      %vm731 = vweird.f32 %v483
      %vm732 = vweird.f32 %v726
      %vm733 = vmor %vm731, %vm732
      %v734 = vsel %vm733, %v726, %v730
      %v735 = vand.u32 2147483647, %v483
      %vm736 = vcmp.eq.f32.partialorder %v735, 8.507059e+37
      %v737 = vand.u32 %v483, 2147483648
      %v738 = vor.u32 1.1754944e-38, %v737
      %v739 = vsel %vm736, %v738, %v734
      %v740 = vmul.f32 1.0, %v739
      %v741 = vrcp.pop %v484
      %v742 = vmul.f32 %v484, %v741
      %v743 = vsub.f32 1.0, %v742
      %v744 = vmul.f32 %v741, %v743
      %v745 = vadd.f32 %v741, %v744
      %vm746 = vweird.f32 %v484
      %vm747 = vweird.f32 %v741
      %vm748 = vmor %vm746, %vm747
      %v749 = vsel %vm748, %v741, %v745
      %v750 = vand.u32 2147483647, %v484
      %vm751 = vcmp.eq.f32.partialorder %v750, 8.507059e+37
      %v752 = vand.u32 %v484, 2147483648
      %v753 = vor.u32 1.1754944e-38, %v752
      %v754 = vsel %vm751, %v753, %v749
      %v755 = vmul.f32 1.0, %v754
      %v756 = vrcp.pop %v485
      %v757 = vmul.f32 %v485, %v756
      %v758 = vsub.f32 1.0, %v757
      %v759 = vmul.f32 %v756, %v758
      %v760 = vadd.f32 %v756, %v759
      %vm761 = vweird.f32 %v485
      %vm762 = vweird.f32 %v756
      %vm763 = vmor %vm761, %vm762
      %v764 = vsel %vm763, %v756, %v760
      %v765 = vand.u32 2147483647, %v485
      %vm766 = vcmp.eq.f32.partialorder %v765, 8.507059e+37
      %v767 = vand.u32 %v485, 2147483648
      %v768 = vor.u32 1.1754944e-38, %v767
      %v769 = vsel %vm766, %v768, %v764
      %v770 = vmul.f32 1.0, %v769
      %790 = vrot.lane.b32.xlu0 %v500, 96
      %v791 = vpop.permute.xlu0 %790
      %792 = vrot.lane.b32.xlu0 %v515, 96
      %v793 = vpop.permute.xlu0 %792
      %794 = vrot.lane.b32.xlu0 %v530, 96
      %v795 = vpop.permute.xlu0 %794
      %796 = vrot.lane.b32.xlu0 %v545, 96
      %v797 = vpop.permute.xlu0 %796
      %798 = vrot.lane.b32.xlu0 %v560, 96
      %v799 = vpop.permute.xlu0 %798
      %800 = vrot.lane.b32.xlu0 %v575, 96
      %v801 = vpop.permute.xlu0 %800
      %802 = vrot.lane.b32.xlu0 %v590, 96
      %v803 = vpop.permute.xlu0 %802
      %804 = vrot.lane.b32.xlu0 %v605, 96
      %v805 = vpop.permute.xlu0 %804
      %806 = vrot.lane.b32.xlu0 %v620, 96
      %v807 = vpop.permute.xlu0 %806
      %808 = vrot.lane.b32.xlu0 %v635, 96
      %v809 = vpop.permute.xlu0 %808
      %810 = vrot.lane.b32.xlu0 %v650, 96
      %v811 = vpop.permute.xlu0 %810
      %812 = vrot.lane.b32.xlu0 %v665, 96
      %v813 = vpop.permute.xlu0 %812
      %814 = vrot.lane.b32.xlu0 %v680, 96
      %v815 = vpop.permute.xlu0 %814
      %816 = vrot.lane.b32.xlu0 %v695, 96
      %v817 = vpop.permute.xlu0 %816
      %818 = vrot.lane.b32.xlu0 %v710, 96
      %v819 = vpop.permute.xlu0 %818
      %820 = vrot.lane.b32.xlu0 %v725, 96
      %v821 = vpop.permute.xlu0 %820
      %822 = vrot.lane.b32.xlu0 %v740, 96
      %v823 = vpop.permute.xlu0 %822
      %824 = vrot.lane.b32.xlu0 %v755, 96
      %v825 = vpop.permute.xlu0 %824
      %826 = vrot.lane.b32.xlu0 %v770, 96
      %v827 = vpop.permute.xlu0 %826
      %v847 = vmul.f32 %v391, %v791
      %v848 = vmul.f32 %v392, %v793
      %v849 = vmul.f32 %v393, %v795
      %v850 = vmul.f32 %v394, %v797
      %v851 = vmul.f32 %v395, %v799
      %v852 = vmul.f32 %v396, %v801
      %v853 = vmul.f32 %v397, %v803
      %v854 = vmul.f32 %v398, %v805
      %v855 = vmul.f32 %v399, %v807
      %v856 = vmul.f32 %v400, %v809
      %v857 = vmul.f32 %v401, %v811
      %v858 = vmul.f32 %v402, %v813
      %v859 = vmul.f32 %v403, %v815
      %v860 = vmul.f32 %v404, %v817
      %v861 = vmul.f32 %v405, %v819
      %v862 = vmul.f32 %v406, %v821
      %v863 = vmul.f32 %v407, %v823
      %v864 = vmul.f32 %v408, %v825
      %v865 = vmul.f32 %v409, %v827
      %v866 = vld [vmem:[%s3] sm:$0xff]
      %v867 = vld [vmem:[%s3 + $0x8] sm:$0xff]
      %v868 = vld [vmem:[%s3 + $0x10] sm:$0xff]
      %v869 = vld [vmem:[%s3 + $0x18] sm:$0xff]
      %v870 = vld [vmem:[%s4] sm:$0x1]
      %v872 = vperm.slane %v870, 0
      %vm874 = vcmask 261120
      %v876 = vsel %vm874, %v847, 0
      %v879 = vsel %vm874, %v848, 0
      %v882 = vsel %vm874, %v849, 0
      %v885 = vsel %vm874, %v850, 0
      %v888 = vsel %vm874, %v851, 0
      %v891 = vsel %vm874, %v852, 0
      %v894 = vsel %vm874, %v853, 0
      %v897 = vsel %vm874, %v854, 0
      %v900 = vsel %vm874, %v855, 0
      %v903 = vsel %vm874, %v856, 0
      %v906 = vsel %vm874, %v857, 0
      %v909 = vsel %vm874, %v858, 0
      %v912 = vsel %vm874, %v859, 0
      %v915 = vsel %vm874, %v860, 0
      %v918 = vsel %vm874, %v861, 0
      %v921 = vsel %vm874, %v862, 0
      %v924 = vsel %vm874, %v863, 0
      %v927 = vsel %vm874, %v864, 0
      %v930 = vsel %vm874, %v865, 0
      %932 = vmatpush.msra.mxu0 0.0
      %933 = vmatpush.msra.mxu0 0.0
      %934 = vmatpush.msra.mxu0 0.0
      %935 = vmatpush.msra.mxu0 0.0
      %936 = vmatpush.msra.mxu0 0.0
      %937 = vmatpush.msra.mxu0 0.0
      %938 = vmatpush.msra.mxu0 0.0
      %939 = vmatpush.msra.mxu0 0.0
      %940 = vmatpush.msra.mxu0 0.0
      %941 = vmatpush.msra.mxu0 0.0
      %942 = vmatpush.msra.mxu0 0.0
      %943 = vmatpush.msra.mxu0 0.0
      %944 = vmatpush.msra.mxu0 %v869
      %945 = vmatpush.msra.mxu0 %v868
      %946 = vmatpush.msra.mxu0 %v867
      %947 = vmatpush.msra.mxu0 %v866
      %948 = vmatmul.f32.gmra.mxu0 %v876
      %v949 = vpop.f32.mrf.mxu0
      %v950 = vadd.f32 %v872, %v949
      %951 = vmatmul.f32.gmra.mxu0 %v879
      %v952 = vpop.f32.mrf.mxu0
      %v953 = vadd.f32 %v872, %v952
      %954 = vmatmul.f32.gmra.mxu0 %v882
      %v955 = vpop.f32.mrf.mxu0
      %v956 = vadd.f32 %v872, %v955
      %957 = vmatmul.f32.gmra.mxu0 %v885
      %v958 = vpop.f32.mrf.mxu0
      %v959 = vadd.f32 %v872, %v958
      %960 = vmatmul.f32.gmra.mxu0 %v888
      %v961 = vpop.f32.mrf.mxu0
      %v962 = vadd.f32 %v872, %v961
      %963 = vmatmul.f32.gmra.mxu0 %v891
      %v964 = vpop.f32.mrf.mxu0
      %v965 = vadd.f32 %v872, %v964
      %966 = vmatmul.f32.gmra.mxu0 %v894
      %v967 = vpop.f32.mrf.mxu0
      %v968 = vadd.f32 %v872, %v967
      %969 = vmatmul.f32.gmra.mxu0 %v897
      %v970 = vpop.f32.mrf.mxu0
      %v971 = vadd.f32 %v872, %v970
      %972 = vmatmul.f32.gmra.mxu0 %v900
      %v973 = vpop.f32.mrf.mxu0
      %v974 = vadd.f32 %v872, %v973
      %975 = vmatmul.f32.gmra.mxu0 %v903
      %v976 = vpop.f32.mrf.mxu0
      %v977 = vadd.f32 %v872, %v976
      %978 = vmatmul.f32.gmra.mxu0 %v906
      %v979 = vpop.f32.mrf.mxu0
      %v980 = vadd.f32 %v872, %v979
      %981 = vmatmul.f32.gmra.mxu0 %v909
      %v982 = vpop.f32.mrf.mxu0
      %v983 = vadd.f32 %v872, %v982
      %984 = vmatmul.f32.gmra.mxu0 %v912
      %v985 = vpop.f32.mrf.mxu0
      %v986 = vadd.f32 %v872, %v985
      %987 = vmatmul.f32.gmra.mxu0 %v915
      %v988 = vpop.f32.mrf.mxu0
      %v989 = vadd.f32 %v872, %v988
      %990 = vmatmul.f32.gmra.mxu0 %v918
      %v991 = vpop.f32.mrf.mxu0
      %v992 = vadd.f32 %v872, %v991
      %993 = vmatmul.f32.gmra.mxu0 %v921
      %v994 = vpop.f32.mrf.mxu0
      %v995 = vadd.f32 %v872, %v994
      %996 = vmatmul.f32.gmra.mxu0 %v924
      %v997 = vpop.f32.mrf.mxu0
      %v998 = vadd.f32 %v872, %v997
      %999 = vmatmul.f32.gmra.mxu0 %v927
      %v1000 = vpop.f32.mrf.mxu0
      %v1001 = vadd.f32 %v872, %v1000
      %1002 = vmatmul.f32.gmra.mxu0 %v930
      %v1003 = vpop.f32.mrf.mxu0
      %v1004 = vadd.f32 %v872, %v1003
      %1005 = vdwg.mxu0
      %vm1006 = vcmask 23552
      %1007 = vst.msk [vmem:[%s226] sm:$0xff] %vm1006, %v950
      %1008 = vst.msk [vmem:[%s226 + $0x8] sm:$0xff] %vm1006, %v953
      %1009 = vst.msk [vmem:[%s226 + $0x10] sm:$0xff] %vm1006, %v956
      %1010 = vst.msk [vmem:[%s226 + $0x18] sm:$0xff] %vm1006, %v959
      %1011 = vst.msk [vmem:[%s226 + $0x20] sm:$0xff] %vm1006, %v962
      %1012 = vst.msk [vmem:[%s226 + $0x28] sm:$0xff] %vm1006, %v965
      %1013 = vst.msk [vmem:[%s226 + $0x30] sm:$0xff] %vm1006, %v968
      %1014 = vst.msk [vmem:[%s226 + $0x38] sm:$0xff] %vm1006, %v971
      %1015 = vst.msk [vmem:[%s226 + $0x40] sm:$0xff] %vm1006, %v974
      %1016 = vst.msk [vmem:[%s226 + $0x48] sm:$0xff] %vm1006, %v977
      %1017 = vst.msk [vmem:[%s226 + $0x50] sm:$0xff] %vm1006, %v980
      %1018 = vst.msk [vmem:[%s226 + $0x58] sm:$0xff] %vm1006, %v983
      %1019 = vst.msk [vmem:[%s226 + $0x60] sm:$0xff] %vm1006, %v986
      %1020 = vst.msk [vmem:[%s226 + $0x68] sm:$0xff] %vm1006, %v989
      %1021 = vst.msk [vmem:[%s226 + $0x70] sm:$0xff] %vm1006, %v992
      %1022 = vst.msk [vmem:[%s226 + $0x78] sm:$0xff] %vm1006, %v995
      %1023 = vst.msk [vmem:[%s226 + $0x80] sm:$0xff] %vm1006, %v998
      %1024 = vst.msk [vmem:[%s226 + $0x88] sm:$0xff] %vm1006, %v1001
      %1025 = vst.msk [vmem:[%s226 + $0x90] sm:$0xff] %vm1006, %v1004
      %s1026 = smul.u32 19, %s16
      %p1027 = scmp.lt.s32.totalorder %s1026, 37
      %s1028 = scalar_select %p1027, %s1026, 37
      %s1029 = smul.addr %s1028, 8
      %s1030 = scalar_lea.vmem %s5, %s1029
      // Predicated region
      $region41: #{att_net_gated_dual.1} parent=39 // pred_check
        %p1031 = pneg %p144
      $region42: #{att_net_gated_dual.1} parent=39 // pred_check_branch
        %1033 = sbr.rel (%p1031) target = $region44
      $region43: #{att_net_gated_dual.1} parent=39 // pred_region
        %s1034 = smul.u32 19, %s16
      $region44: #{att_net_gated_dual.1} parent=39 // pred_fallthru
        _
    $region40: #{att_net_gated_dual.1} parent=5 // pred_fallthru
      _
    %p1035 = scmp.le.s32.totalorder 2, %s11
    // Predicated region
    $region45: #{att_net_gated_dual.1} parent=5 // pred_check
      %p1036 = pneg %p1035
    $region46: #{att_net_gated_dual.1} parent=5 // pred_check_branch
      %1038 = sbr.rel (%p1036) target = $region48
    $region47: #{att_net_gated_dual.1} parent=5 // pred_region
      %s1039 = ssub.s32 %s11, 2
      // Predicated region
      $region49: #{att_net_gated_dual.1} parent=47 // pred_check
        %p1040 = pneg %p150
      $region50: #{att_net_gated_dual.1} parent=47 // pred_check_branch
        %1042 = sbr.rel (%p1040) target = $region52
      $region51: #{att_net_gated_dual.1} parent=47 // pred_region
        %s1043 = smul.u32 19, %s17
        %p1044 = scmp.lt.s32.totalorder %s1043, 37
        %s1045 = scalar_select %p1044, %s1043, 37
        %s1046 = smul.addr %s1045, 8
        %s1047 = scalar_lea.vmem %s5, %s1046
      $region52: #{att_net_gated_dual.1} parent=47 // pred_fallthru
        _
    $region48: #{att_net_gated_dual.1} parent=5 // pred_fallthru
      _
  $region6: #{att_net_gated_dual.1} parent=0 // loop_footer
    %s15 = sadd.s32 1, %s11
  $region7: #{att_net_gated_dual.1} parent=0 // loop_footer_branch
    %10 = sbr.rel target = $region3
  $region8: #{att_net_gated_dual.1} parent=0 // loop_exit
    _

</llo_original>
